<compile_context>
chip_gen: v7x
topology: tpu7x:2x2x1
jax: 0.10.0
libtpu: 0.0.40
codegen_flags: <defaults>
</compile_context>

<pallas_src>
import functools

import jax
import jax.numpy as jnp
from jax.experimental import pallas as pl
from jax.experimental.pallas import tpu as pltpu


# ----------------------------- fused ConvBlock kernel -----------------------------

def _conv_block_kernel(x_ref, w1_ref, b1_ref, w2_ref, b2_ref, mask_ref, sel_ref,
                       o_ref, h1p_ref, *, Wp, L):
    """conv3x3+ReLU -> conv3x3+ReLU -> 2x2/s2 maxpool for one image.

    x_ref:    (1, Cin, P)    zero-padded input, channel-major, spatial flattened
                             with row pitch Wp (P = (H+3)*Wp).
    w1_ref:   (Mid, 9*Cin)   conv1 weights, (dy,dx)-major / channel-minor.
    b1_ref:   (Mid, 1)
    w2_ref:   (Mid, 9*Mid)   conv2 weights.
    b2_ref:   (Mid, 1)
    mask_ref: (1, L)         1.0 on the W valid columns of each Wp-pitch row.
    sel_ref:  (L, Ho*Wo)     one-hot columns selecting the 2x2-pool anchors.
    o_ref:    (1, Mid, Ho*Wo)
    h1p_ref:  (Mid, P)       VMEM scratch: zero-framed conv1 activation.
    """
    xp = x_ref[0]                                                  # (Cin, P)

    # ---- conv1: 9 shifted flat views -> one K = 9*Cin MXU matmul.
    taps1 = jnp.concatenate(
        [xp[:, dy * Wp + dx: dy * Wp + dx + L]
         for dy in range(3) for dx in range(3)], axis=0)           # (9*Cin, L)
    h1 = jnp.dot(w1_ref[...], taps1, preferred_element_type=jnp.float32)
    h1 = jnp.maximum(h1 + b1_ref[...], 0.0) * mask_ref[...]        # bias+ReLU, zero junk cols

    # ---- keep the intermediate in VMEM, re-framed with a zero 'same' border.
    h1p_ref[...] = jnp.zeros_like(h1p_ref)
    h1p_ref[:, Wp + 1: Wp + 1 + L] = h1
    h1p = h1p_ref[...]                                             # (Mid, P)

    # ---- conv2: identical structure, K = 9*Mid.
    taps2 = jnp.concatenate(
        [h1p[:, dy * Wp + dx: dy * Wp + dx + L]
         for dy in range(3) for dx in range(3)], axis=0)           # (9*Mid, L)
    h2 = jnp.dot(w2_ref[...], taps2, preferred_element_type=jnp.float32)
    h2 = jnp.maximum(h2 + b2_ref[...], 0.0)                        # (Mid, L)

    # ---- fused 2x2 / stride-2 maxpool.
    # pair-max along w (q,q+1) then along h (q,q+Wp) via circular lane rolls;
    # the wrap-around only pollutes non-anchor / junk positions.
    hmax = jnp.maximum(h2, pltpu.roll(h2, shift=L - 1, axis=1))
    vmax = jnp.maximum(hmax, pltpu.roll(hmax, shift=L - Wp, axis=1))
    # gather the stride-2 anchors with a one-hot matmul -> dense (Mid, Ho*Wo).
    pooled = jnp.dot(vmax, sel_ref[...], preferred_element_type=jnp.float32)
    o_ref[0] = pooled.astype(o_ref.dtype)


@jax.jit
def conv_block_forward(x_nchw, params):
    """Matches ConvBlock.forward: conv1 -> relu -> conv2 -> relu -> maxpool(2,2)/s2."""
    N, Cin, H, W = x_nchw.shape
    Mid = params["w1"].shape[0]
    # TODO(synk): nn.MaxPool2d(padding='same') is not valid PyTorch; for even H/W
    # a plain 2x2/stride-2 pool (no padding) is the intended behaviour.
    assert H % 2 == 0 and W % 2 == 0
    Ho, Wo = H // 2, W // 2

    Wp = ((W + 2 + 7) // 8) * 8          # padded row pitch (lane-tile friendly)
    L = H * Wp                           # flattened compute-slab length
    P = (H + 3) * Wp                     # padded buffer length (1 top + 2 bottom rows)

    # zero 'same' padding; keep NCHW (channel-major) and flatten spatial onto lanes.
    xp = jnp.pad(x_nchw, ((0, 0), (0, 0), (1, 2), (1, Wp - W - 1)))
    xflat = xp.reshape(N, Cin, P)

    # OIHW -> (Cout, 9*Cin) with (dy,dx)-major / channel-minor to match tap order.
    w1r = jnp.transpose(params["w1"], (0, 2, 3, 1)).reshape(Mid, 9 * Cin)
    w2r = jnp.transpose(params["w2"], (0, 2, 3, 1)).reshape(Mid, 9 * Mid)
    b1 = params["b1"].reshape(Mid, 1)
    b2 = params["b2"].reshape(Mid, 1)

    # mask of the W valid columns within each Wp-pitch row of the compute slab.
    col = jnp.arange(L, dtype=jnp.int32) % Wp
    mask = (col < W).astype(x_nchw.dtype).reshape(1, L)

    # one-hot selection matrix picking the pool anchors q = 2*(ho*Wp + wo).
    anchors = (2 * Wp) * jnp.arange(Ho, dtype=jnp.int32)[:, None] \
        + 2 * jnp.arange(Wo, dtype=jnp.int32)[None, :]
    sel = (jnp.arange(L, dtype=jnp.int32)[:, None]
           == anchors.reshape(-1)[None, :]).astype(x_nchw.dtype)   # (L, Ho*Wo)

    kernel = functools.partial(_conv_block_kernel, Wp=Wp, L=L)
    out = pl.pallas_call(
        kernel,
        out_shape=jax.ShapeDtypeStruct((N, Mid, Ho * Wo), x_nchw.dtype),
        grid=(N,),
        in_specs=[
            pl.BlockSpec((1, Cin, P), lambda n: (n, 0, 0)),
            pl.BlockSpec((Mid, 9 * Cin), lambda n: (0, 0)),
            pl.BlockSpec((Mid, 1), lambda n: (0, 0)),
            pl.BlockSpec((Mid, 9 * Mid), lambda n: (0, 0)),
            pl.BlockSpec((Mid, 1), lambda n: (0, 0)),
            pl.BlockSpec((1, L), lambda n: (0, 0)),
            pl.BlockSpec((L, Ho * Wo), lambda n: (0, 0)),
        ],
        out_specs=pl.BlockSpec((1, Mid, Ho * Wo), lambda n: (n, 0, 0)),
        scratch_shapes=[pltpu.VMEM((Mid, P), jnp.float32)],
        compiler_params=pltpu.CompilerParams(
            dimension_semantics=("parallel",)),     # v7x: one image per TensorCore
    )(xflat, w1r, b1, w2r, b2, mask, sel)
    return out.reshape(N, Mid, Ho, Wo)              # already NCHW — no transposes


# ----------------------------- params / reference -----------------------------

def init_conv_block_params(key, in_channels, out_channels, r):
    mid = int(round(out_channels / r))
    k1, k2, k3, k4 = jax.random.split(key, 4)
    # PyTorch Conv2d default init: U(-1/sqrt(fan_in), 1/sqrt(fan_in)), OIHW weights.
    bound1 = 1.0 / jnp.sqrt(in_channels * 9.0)
    bound2 = 1.0 / jnp.sqrt(mid * 9.0)
    return {
        "w1": jax.random.uniform(k1, (mid, in_channels, 3, 3), jnp.float32,
                                 -bound1, bound1),
        "b1": jax.random.uniform(k2, (mid,), jnp.float32, -bound1, bound1),
        "w2": jax.random.uniform(k3, (mid, mid, 3, 3), jnp.float32,
                                 -bound2, bound2),
        "b2": jax.random.uniform(k4, (mid,), jnp.float32, -bound2, bound2),
    }


def _reference(x_nchw, params):
    def conv(x, w, b):
        y = jax.lax.conv_general_dilated(
            x, w, window_strides=(1, 1), padding="SAME",
            dimension_numbers=("NCHW", "OIHW", "NCHW"))
        return jnp.maximum(y + b[None, :, None, None], 0.0)

    y = conv(x_nchw, params["w1"], params["b1"])
    y = conv(y, params["w2"], params["b2"])
    return jax.lax.reduce_window(y, -jnp.inf, jax.lax.max,
                                 (1, 1, 2, 2), (1, 1, 2, 2), "VALID")


if __name__ == "__main__":
    key = jax.random.PRNGKey(0)
    kx, kp = jax.random.split(key)

    # ConvBlock(in_channels=4, out_channels=16, r=2) -> mid channels = 8
    N, Cin, H, W = 2, 4, 16, 16
    x = jax.random.normal(kx, (N, Cin, H, W), dtype=jnp.float32)
    params = init_conv_block_params(kp, in_channels=Cin, out_channels=16, r=2)

    out = conv_block_forward(x, params)
    out = jax.block_until_ready(out)

    ref = _reference(x, params)
    assert out.shape == ref.shape == (N, 8, H // 2, W // 2), out.shape
    assert jnp.allclose(out, ref, rtol=1e-4, atol=1e-4), float(
        jnp.max(jnp.abs(out - ref)))

    print("KERNEL_OK")
</pallas_src>

<mosaic_0001>
module attributes {stable_mosaic.version = 11 : i64} {
  func.func @_conv_block_kernel(%arg0: i32, %arg1: memref<1x4x456xf32, #tpu.memory_space<vmem>>, %arg2: memref<8x36xf32, #tpu.memory_space<vmem>>, %arg3: memref<8x1xf32, #tpu.memory_space<vmem>>, %arg4: memref<8x72xf32, #tpu.memory_space<vmem>>, %arg5: memref<8x1xf32, #tpu.memory_space<vmem>>, %arg6: memref<1x384xf32, #tpu.memory_space<vmem>>, %arg7: memref<384x64xf32, #tpu.memory_space<vmem>>, %arg8: memref<1x8x64xf32, #tpu.memory_space<vmem>>, %arg9: memref<8x456xf32, #tpu.memory_space<vmem>>) attributes {dimension_semantics = [#tpu.dimension_semantics<parallel>], iteration_bounds = array<i64: 2>, scalar_prefetch = 0 : i64, scratch_operands = 1 : i64, tpu.core_type = #tpu.core_type<tc>, window_params = [{transform_indices = @transform_0, window_bounds = array<i64: 1, 4, 456>}, {pipeline_mode = #tpu.pipeline_mode<synchronous>, transform_indices = @transform_1, window_bounds = array<i64: 8, 36>}, {pipeline_mode = #tpu.pipeline_mode<synchronous>, transform_indices = @transform_2, window_bounds = array<i64: 8, 1>}, {pipeline_mode = #tpu.pipeline_mode<synchronous>, transform_indices = @transform_3, window_bounds = array<i64: 8, 72>}, {pipeline_mode = #tpu.pipeline_mode<synchronous>, transform_indices = @transform_4, window_bounds = array<i64: 8, 1>}, {pipeline_mode = #tpu.pipeline_mode<synchronous>, transform_indices = @transform_5, window_bounds = array<i64: 1, 384>}, {pipeline_mode = #tpu.pipeline_mode<synchronous>, transform_indices = @transform_6, window_bounds = array<i64: 384, 64>}, {transform_indices = @transform_7, window_bounds = array<i64: 1, 8, 64>}]} {
    %c0 = arith.constant 0 : index
    %c0_0 = arith.constant 0 : index
    %c0_1 = arith.constant 0 : index
    %0 = vector.load %arg1[%c0, %c0_0, %c0_1] : memref<1x4x456xf32, #tpu.memory_space<vmem>>, vector<1x4x456xf32>
    %1 = vector.shape_cast %0 : vector<1x4x456xf32> to vector<4x456xf32>
    %2 = vector.extract_strided_slice %1 {offsets = [0, 0], sizes = [4, 384], strides = [1, 1]} : vector<4x456xf32> to vector<4x384xf32>
    %3 = vector.extract_strided_slice %1 {offsets = [0, 1], sizes = [4, 384], strides = [1, 1]} : vector<4x456xf32> to vector<4x384xf32>
    %4 = vector.extract_strided_slice %1 {offsets = [0, 2], sizes = [4, 384], strides = [1, 1]} : vector<4x456xf32> to vector<4x384xf32>
    %5 = vector.extract_strided_slice %1 {offsets = [0, 24], sizes = [4, 384], strides = [1, 1]} : vector<4x456xf32> to vector<4x384xf32>
    %6 = vector.extract_strided_slice %1 {offsets = [0, 25], sizes = [4, 384], strides = [1, 1]} : vector<4x456xf32> to vector<4x384xf32>
    %7 = vector.extract_strided_slice %1 {offsets = [0, 26], sizes = [4, 384], strides = [1, 1]} : vector<4x456xf32> to vector<4x384xf32>
    %8 = vector.extract_strided_slice %1 {offsets = [0, 48], sizes = [4, 384], strides = [1, 1]} : vector<4x456xf32> to vector<4x384xf32>
    %9 = vector.extract_strided_slice %1 {offsets = [0, 49], sizes = [4, 384], strides = [1, 1]} : vector<4x456xf32> to vector<4x384xf32>
    %10 = vector.extract_strided_slice %1 {offsets = [0, 50], sizes = [4, 384], strides = [1, 1]} : vector<4x456xf32> to vector<4x384xf32>
    %11 = tpu.concatenate %2, %3, %4, %5, %6, %7, %8, %9, %10 in 0 : vector<4x384xf32>, vector<4x384xf32>, vector<4x384xf32>, vector<4x384xf32>, vector<4x384xf32>, vector<4x384xf32>, vector<4x384xf32>, vector<4x384xf32>, vector<4x384xf32> -> vector<36x384xf32>
    %c0_2 = arith.constant 0 : index
    %c0_3 = arith.constant 0 : index
    %12 = vector.load %arg2[%c0_2, %c0_3] : memref<8x36xf32, #tpu.memory_space<vmem>>, vector<8x36xf32>
    %cst = arith.constant dense<0.000000e+00> : vector<8x384xf32>
    %13 = tpu.matmul %12, %11, %cst {dimension_numbers = #tpu.dot_dimension_numbers<[1], [0], [0], [1], [0, 0, 1, 1], [], []>} : vector<8x36xf32>, vector<36x384xf32>, vector<8x384xf32> -> vector<8x384xf32>
    %c0_4 = arith.constant 0 : index
    %c0_5 = arith.constant 0 : index
    %14 = vector.load %arg3[%c0_4, %c0_5] : memref<8x1xf32, #tpu.memory_space<vmem>>, vector<8x1xf32>
    %15 = vector.broadcast %14 : vector<8x1xf32> to vector<8x384xf32>
    %16 = arith.addf %13, %15 : vector<8x384xf32>
    %cst_6 = arith.constant 0.000000e+00 : f32
    %17 = vector.broadcast %cst_6 : f32 to vector<8x384xf32>
    %18 = arith.maximumf %16, %17 : vector<8x384xf32>
    %c0_7 = arith.constant 0 : index
    %c0_8 = arith.constant 0 : index
    %19 = vector.load %arg6[%c0_7, %c0_8] : memref<1x384xf32, #tpu.memory_space<vmem>>, vector<1x384xf32>
    %20 = vector.broadcast %19 : vector<1x384xf32> to vector<8x384xf32>
    %21 = arith.mulf %18, %20 : vector<8x384xf32>
    %cst_9 = arith.constant 0.000000e+00 : f32
    %22 = vector.broadcast %cst_9 : f32 to vector<8x456xf32>
    %c0_10 = arith.constant 0 : index
    %c0_11 = arith.constant 0 : index
    %23 = vector.load %arg9[%c0_10, %c0_11] : memref<8x456xf32, #tpu.memory_space<vmem>>, vector<8x456xf32>
    tpu.vector_store %arg9[%c0_10, %c0_11], %22 {strides = array<i32>} : memref<8x456xf32, #tpu.memory_space<vmem>>, vector<8x456xf32>,
    %c0_12 = arith.constant 0 : index
    %c25 = arith.constant 25 : index
    %24 = vector.load %arg9[%c0_12, %c25] : memref<8x456xf32, #tpu.memory_space<vmem>>, vector<8x384xf32>
    tpu.vector_store %arg9[%c0_12, %c25], %21 {strides = array<i32>} : memref<8x456xf32, #tpu.memory_space<vmem>>, vector<8x384xf32>,
    %c0_13 = arith.constant 0 : index
    %c0_14 = arith.constant 0 : index
    %25 = vector.load %arg9[%c0_13, %c0_14] : memref<8x456xf32, #tpu.memory_space<vmem>>, vector<8x456xf32>
    %26 = vector.extract_strided_slice %25 {offsets = [0, 0], sizes = [8, 384], strides = [1, 1]} : vector<8x456xf32> to vector<8x384xf32>
    %27 = vector.extract_strided_slice %25 {offsets = [0, 1], sizes = [8, 384], strides = [1, 1]} : vector<8x456xf32> to vector<8x384xf32>
    %28 = vector.extract_strided_slice %25 {offsets = [0, 2], sizes = [8, 384], strides = [1, 1]} : vector<8x456xf32> to vector<8x384xf32>
    %29 = vector.extract_strided_slice %25 {offsets = [0, 24], sizes = [8, 384], strides = [1, 1]} : vector<8x456xf32> to vector<8x384xf32>
    %30 = vector.extract_strided_slice %25 {offsets = [0, 25], sizes = [8, 384], strides = [1, 1]} : vector<8x456xf32> to vector<8x384xf32>
    %31 = vector.extract_strided_slice %25 {offsets = [0, 26], sizes = [8, 384], strides = [1, 1]} : vector<8x456xf32> to vector<8x384xf32>
    %32 = vector.extract_strided_slice %25 {offsets = [0, 48], sizes = [8, 384], strides = [1, 1]} : vector<8x456xf32> to vector<8x384xf32>
    %33 = vector.extract_strided_slice %25 {offsets = [0, 49], sizes = [8, 384], strides = [1, 1]} : vector<8x456xf32> to vector<8x384xf32>
    %34 = vector.extract_strided_slice %25 {offsets = [0, 50], sizes = [8, 384], strides = [1, 1]} : vector<8x456xf32> to vector<8x384xf32>
    %35 = tpu.concatenate %26, %27, %28, %29, %30, %31, %32, %33, %34 in 0 : vector<8x384xf32>, vector<8x384xf32>, vector<8x384xf32>, vector<8x384xf32>, vector<8x384xf32>, vector<8x384xf32>, vector<8x384xf32>, vector<8x384xf32>, vector<8x384xf32> -> vector<72x384xf32>
    %c0_15 = arith.constant 0 : index
    %c0_16 = arith.constant 0 : index
    %36 = vector.load %arg4[%c0_15, %c0_16] : memref<8x72xf32, #tpu.memory_space<vmem>>, vector<8x72xf32>
    %cst_17 = arith.constant dense<0.000000e+00> : vector<8x384xf32>
    %37 = tpu.matmul %36, %35, %cst_17 {dimension_numbers = #tpu.dot_dimension_numbers<[1], [0], [0], [1], [0, 0, 1, 1], [], []>} : vector<8x72xf32>, vector<72x384xf32>, vector<8x384xf32> -> vector<8x384xf32>
    %c0_18 = arith.constant 0 : index
    %c0_19 = arith.constant 0 : index
    %38 = vector.load %arg5[%c0_18, %c0_19] : memref<8x1xf32, #tpu.memory_space<vmem>>, vector<8x1xf32>
    %39 = vector.broadcast %38 : vector<8x1xf32> to vector<8x384xf32>
    %40 = arith.addf %37, %39 : vector<8x384xf32>
    %cst_20 = arith.constant 0.000000e+00 : f32
    %41 = vector.broadcast %cst_20 : f32 to vector<8x384xf32>
    %42 = arith.maximumf %40, %41 : vector<8x384xf32>
    %c383_i32 = arith.constant 383 : i32
    %43 = tpu.dynamic_rotate %42 by %c383_i32 dim 1 : vector<8x384xf32>, i32 -> vector<8x384xf32>
    %44 = arith.maximumf %42, %43 : vector<8x384xf32>
    %c360_i32 = arith.constant 360 : i32
    %45 = tpu.dynamic_rotate %44 by %c360_i32 dim 1 : vector<8x384xf32>, i32 -> vector<8x384xf32>
    %46 = arith.maximumf %44, %45 : vector<8x384xf32>
    %c0_21 = arith.constant 0 : index
    %c0_22 = arith.constant 0 : index
    %47 = vector.load %arg7[%c0_21, %c0_22] : memref<384x64xf32, #tpu.memory_space<vmem>>, vector<384x64xf32>
    %cst_23 = arith.constant dense<0.000000e+00> : vector<8x64xf32>
    %48 = tpu.matmul %46, %47, %cst_23 {dimension_numbers = #tpu.dot_dimension_numbers<[1], [0], [0], [1], [0, 0, 1, 1], [], []>} : vector<8x384xf32>, vector<384x64xf32>, vector<8x64xf32> -> vector<8x64xf32>
    %c0_24 = arith.constant 0 : index
    %c0_25 = arith.constant 0 : index
    %c0_26 = arith.constant 0 : index
    %49 = vector.load %arg8[%c0_24, %c0_25, %c0_26] : memref<1x8x64xf32, #tpu.memory_space<vmem>>, vector<1x8x64xf32>
    %50 = vector.shape_cast %49 : vector<1x8x64xf32> to vector<8x64xf32>
    %51 = vector.shape_cast %48 : vector<8x64xf32> to vector<1x8x64xf32>
    tpu.vector_store %arg8[%c0_24, %c0_25, %c0_26], %51 {strides = array<i32>} : memref<1x8x64xf32, #tpu.memory_space<vmem>>, vector<1x8x64xf32>,
    return
  }
  func.func @transform_0(%arg0: i32) -> (i32, i32, i32) {
    %c0_i32 = arith.constant 0 : i32
    %c0_i32_0 = arith.constant 0 : i32
    %c0_i32_1 = arith.constant 0 : i32
    return %arg0, %c0_i32, %c0_i32_0 : i32, i32, i32
  }
  func.func @transform_1(%arg0: i32) -> (i32, i32) {
    %c0_i32 = arith.constant 0 : i32
    %c0_i32_0 = arith.constant 0 : i32
    %c0_i32_1 = arith.constant 0 : i32
    return %c0_i32, %c0_i32_0 : i32, i32
  }
  func.func @transform_2(%arg0: i32) -> (i32, i32) {
    %c0_i32 = arith.constant 0 : i32
    %c0_i32_0 = arith.constant 0 : i32
    %c0_i32_1 = arith.constant 0 : i32
    return %c0_i32, %c0_i32_0 : i32, i32
  }
  func.func @transform_3(%arg0: i32) -> (i32, i32) {
    %c0_i32 = arith.constant 0 : i32
    %c0_i32_0 = arith.constant 0 : i32
    %c0_i32_1 = arith.constant 0 : i32
    return %c0_i32, %c0_i32_0 : i32, i32
  }
  func.func @transform_4(%arg0: i32) -> (i32, i32) {
    %c0_i32 = arith.constant 0 : i32
    %c0_i32_0 = arith.constant 0 : i32
    %c0_i32_1 = arith.constant 0 : i32
    return %c0_i32, %c0_i32_0 : i32, i32
  }
  func.func @transform_5(%arg0: i32) -> (i32, i32) {
    %c0_i32 = arith.constant 0 : i32
    %c0_i32_0 = arith.constant 0 : i32
    %c0_i32_1 = arith.constant 0 : i32
    return %c0_i32, %c0_i32_0 : i32, i32
  }
  func.func @transform_6(%arg0: i32) -> (i32, i32) {
    %c0_i32 = arith.constant 0 : i32
    %c0_i32_0 = arith.constant 0 : i32
    %c0_i32_1 = arith.constant 0 : i32
    return %c0_i32, %c0_i32_0 : i32, i32
  }
  func.func @transform_7(%arg0: i32) -> (i32, i32, i32) {
    %c0_i32 = arith.constant 0 : i32
    %c0_i32_0 = arith.constant 0 : i32
    %c0_i32_1 = arith.constant 0 : i32
    return %arg0, %c0_i32, %c0_i32_0 : i32, i32, i32
  }
}

</mosaic_0001>

<llo_original>
// kernel: conv_block_forward.1
$region0: #{conv_block_forward.1}
  #allocation0 [shape = 'u32[]', space=smem, size = 0x4, offset = 0x4, fixed_abs, tag = 'smem constant byte address 0x4 - core index']
  #allocation1 [shape = 'u32[144,128]{1,0:T(1,128)}', space=vmem, size = 0x12000, scoped, tag = 'internal scratch']
  #allocation2 [shape = 'f32[8,456]{1,0:T(8,128)}', space=vmem, size = 0x4000, scoped, tag = 'scratch operand']
  %s0 = inlined_call_operand.vmem [shape: f32[2,4,456], index: 0, kind: input, shape index: {}]
  %s1 = inlined_call_operand.vmem [shape: f32[8,36], index: 1, kind: input, shape index: {}]
  %s2 = inlined_call_operand.vmem [shape: f32[8,1], index: 2, kind: input, shape index: {}]
  %s3 = inlined_call_operand.vmem [shape: f32[8,72], index: 3, kind: input, shape index: {}]
  %s4 = inlined_call_operand.vmem [shape: f32[8,1], index: 4, kind: input, shape index: {}]
  %s5 = inlined_call_operand.vmem [shape: f32[1,384], index: 5, kind: input, shape index: {}]
  %s6 = inlined_call_operand.vmem [shape: f32[384,64], index: 6, kind: input, shape index: {}]
  %s7 = inlined_call_operand.vmem [shape: f32[2,8,64], index: 7, kind: output, shape index: {}]
  %s8 = sld [smem:[#allocation0]]
  $region61: #{conv_block_forward.1} parent=0
    _
  %s10 = ssub.s32 1, %s8
  %s11 = scalar_select 0, %s10, %s8
  loop: start=0, step=1, limit=4
  $region2: #{conv_block_forward.1} parent=0 // loop_pre_header
    _
  $region3: #{conv_block_forward.1} parent=0 // loop_header
    %s13 = sphi 0, %s17
    %p14 = scmp.ge.s32.totalorder %s13, 4
    %s23 = sphi 0, %s25
    %s26 = sphi 0, %s23
    %s27 = sphi 0, %s26
    %s43 = sphi 0, %s27
    %s47 = sphi 0, %s47
    %s49 = sphi 0, %s47
    %s50 = sphi 0, %s49
    %s64 = sphi 0, %s50
    %s68 = sphi 0, %s68
    %s70 = sphi 0, %s68
    %s71 = sphi 0, %s70
    %s85 = sphi 0, %s71
    %s89 = sphi 0, %s89
    %s91 = sphi 0, %s89
    %s92 = sphi 0, %s91
    %s106 = sphi 0, %s92
    %s110 = sphi 0, %s110
    %s112 = sphi 0, %s110
    %s113 = sphi 0, %s112
    %s127 = sphi 0, %s113
    %s131 = sphi 0, %s131
    %s133 = sphi 0, %s131
    %s134 = sphi 0, %s133
    %s148 = sphi 0, %s134
    %s152 = sphi 0, %s152
    %s154 = sphi 0, %s152
    %s155 = sphi 0, %s154
    %s169 = sphi 0, %s155
    %s175 = sphi 0, %s177
    %s178 = sphi 0, %s175
    %s179 = sphi 0, %s178
    %s195 = sphi 0, %s179
  $region4: #{conv_block_forward.1} parent=0 // loop_header_branch
    %16 = sbr.rel (%p14) target = $region8
  $region5: #{conv_block_forward.1} parent=0 // loop_body
    %s18 = ssub.s32 %s13, 1
    %s19 = ssub.s32 %s13, 2
    %s20 = sadd.s32 %s13, 1
    %s21 = ssub.s32 %s13, %s20
    %p22 = scmp.eq.s32.totalorder %s21, 0
    %s24 = sadd.s32 %s23, 1
    %s25 = scalar_select %p22, %s23, %s24
    %p28 = pneg %p22
    %p29 = scmp.eq.s32.totalorder %s13, 1
    %p30 = por %p28, %p29
    %p31 = scmp.ne.s32.totalorder %s23, %s26
    %p32 = scmp.eq.s32.totalorder %s13, 0
    %p33 = por %p31, %p32
    %p34 = scmp.ne.s32.totalorder %s23, %s26
    %p35 = scmp.eq.s32.totalorder %s18, 1
    %p36 = por %p34, %p35
    %p37 = scmp.ne.s32.totalorder %s26, %s27
    %p38 = scmp.eq.s32.totalorder %s18, 0
    %p39 = por %p37, %p38
    %p40 = scmp.ne.s32.totalorder %s26, %s27
    %p41 = scmp.eq.s32.totalorder %s19, 1
    %p42 = por %p40, %p41
    %p44 = scmp.ne.s32.totalorder %s27, %s43
    %p45 = scmp.eq.s32.totalorder %s19, 0
    %p46 = por %p44, %p45
    %s48 = sadd.s32 %s47, 1
    %p51 = scmp.eq.s32.totalorder %s13, 1
    %p52 = scmp.ne.s32.totalorder %s47, %s49
    %p53 = scmp.eq.s32.totalorder %s13, 0
    %p54 = por %p52, %p53
    %p55 = scmp.ne.s32.totalorder %s47, %s49
    %p56 = scmp.eq.s32.totalorder %s18, 1
    %p57 = por %p55, %p56
    %p58 = scmp.ne.s32.totalorder %s49, %s50
    %p59 = scmp.eq.s32.totalorder %s18, 0
    %p60 = por %p58, %p59
    %p61 = scmp.ne.s32.totalorder %s49, %s50
    %p62 = scmp.eq.s32.totalorder %s19, 1
    %p63 = por %p61, %p62
    %p65 = scmp.ne.s32.totalorder %s50, %s64
    %p66 = scmp.eq.s32.totalorder %s19, 0
    %p67 = por %p65, %p66
    %s69 = sadd.s32 %s68, 1
    %p72 = scmp.eq.s32.totalorder %s13, 1
    %p73 = scmp.ne.s32.totalorder %s68, %s70
    %p74 = scmp.eq.s32.totalorder %s13, 0
    %p75 = por %p73, %p74
    %p76 = scmp.ne.s32.totalorder %s68, %s70
    %p77 = scmp.eq.s32.totalorder %s18, 1
    %p78 = por %p76, %p77
    %p79 = scmp.ne.s32.totalorder %s70, %s71
    %p80 = scmp.eq.s32.totalorder %s18, 0
    %p81 = por %p79, %p80
    %p82 = scmp.ne.s32.totalorder %s70, %s71
    %p83 = scmp.eq.s32.totalorder %s19, 1
    %p84 = por %p82, %p83
    %p86 = scmp.ne.s32.totalorder %s71, %s85
    %p87 = scmp.eq.s32.totalorder %s19, 0
    %p88 = por %p86, %p87
    %s90 = sadd.s32 %s89, 1
    %p93 = scmp.eq.s32.totalorder %s13, 1
    %p94 = scmp.ne.s32.totalorder %s89, %s91
    %p95 = scmp.eq.s32.totalorder %s13, 0
    %p96 = por %p94, %p95
    %p97 = scmp.ne.s32.totalorder %s89, %s91
    %p98 = scmp.eq.s32.totalorder %s18, 1
    %p99 = por %p97, %p98
    %p100 = scmp.ne.s32.totalorder %s91, %s92
    %p101 = scmp.eq.s32.totalorder %s18, 0
    %p102 = por %p100, %p101
    %p103 = scmp.ne.s32.totalorder %s91, %s92
    %p104 = scmp.eq.s32.totalorder %s19, 1
    %p105 = por %p103, %p104
    %p107 = scmp.ne.s32.totalorder %s92, %s106
    %p108 = scmp.eq.s32.totalorder %s19, 0
    %p109 = por %p107, %p108
    %s111 = sadd.s32 %s110, 1
    %p114 = scmp.eq.s32.totalorder %s13, 1
    %p115 = scmp.ne.s32.totalorder %s110, %s112
    %p116 = scmp.eq.s32.totalorder %s13, 0
    %p117 = por %p115, %p116
    %p118 = scmp.ne.s32.totalorder %s110, %s112
    %p119 = scmp.eq.s32.totalorder %s18, 1
    %p120 = por %p118, %p119
    %p121 = scmp.ne.s32.totalorder %s112, %s113
    %p122 = scmp.eq.s32.totalorder %s18, 0
    %p123 = por %p121, %p122
    %p124 = scmp.ne.s32.totalorder %s112, %s113
    %p125 = scmp.eq.s32.totalorder %s19, 1
    %p126 = por %p124, %p125
    %p128 = scmp.ne.s32.totalorder %s113, %s127
    %p129 = scmp.eq.s32.totalorder %s19, 0
    %p130 = por %p128, %p129
    %s132 = sadd.s32 %s131, 1
    %p135 = scmp.eq.s32.totalorder %s13, 1
    %p136 = scmp.ne.s32.totalorder %s131, %s133
    %p137 = scmp.eq.s32.totalorder %s13, 0
    %p138 = por %p136, %p137
    %p139 = scmp.ne.s32.totalorder %s131, %s133
    %p140 = scmp.eq.s32.totalorder %s18, 1
    %p141 = por %p139, %p140
    %p142 = scmp.ne.s32.totalorder %s133, %s134
    %p143 = scmp.eq.s32.totalorder %s18, 0
    %p144 = por %p142, %p143
    %p145 = scmp.ne.s32.totalorder %s133, %s134
    %p146 = scmp.eq.s32.totalorder %s19, 1
    %p147 = por %p145, %p146
    %p149 = scmp.ne.s32.totalorder %s134, %s148
    %p150 = scmp.eq.s32.totalorder %s19, 0
    %p151 = por %p149, %p150
    %s153 = sadd.s32 %s152, 1
    %p156 = scmp.eq.s32.totalorder %s13, 1
    %p157 = scmp.ne.s32.totalorder %s152, %s154
    %p158 = scmp.eq.s32.totalorder %s13, 0
    %p159 = por %p157, %p158
    %p160 = scmp.ne.s32.totalorder %s152, %s154
    %p161 = scmp.eq.s32.totalorder %s18, 1
    %p162 = por %p160, %p161
    %p163 = scmp.ne.s32.totalorder %s154, %s155
    %p164 = scmp.eq.s32.totalorder %s18, 0
    %p165 = por %p163, %p164
    %p166 = scmp.ne.s32.totalorder %s154, %s155
    %p167 = scmp.eq.s32.totalorder %s19, 1
    %p168 = por %p166, %p167
    %p170 = scmp.ne.s32.totalorder %s155, %s169
    %p171 = scmp.eq.s32.totalorder %s19, 0
    %p172 = por %p170, %p171
    %s173 = ssub.s32 %s13, %s20
    %p174 = scmp.eq.s32.totalorder %s173, 0
    %s176 = sadd.s32 %s175, 1
    %s177 = scalar_select %p174, %s175, %s176
    %p180 = pneg %p174
    %p181 = scmp.eq.s32.totalorder %s13, 1
    %p182 = por %p180, %p181
    %p183 = scmp.ne.s32.totalorder %s175, %s178
    %p184 = scmp.eq.s32.totalorder %s13, 0
    %p185 = por %p183, %p184
    %p186 = scmp.ne.s32.totalorder %s175, %s178
    %p187 = scmp.eq.s32.totalorder %s18, 1
    %p188 = por %p186, %p187
    %p189 = scmp.ne.s32.totalorder %s178, %s179
    %p190 = scmp.eq.s32.totalorder %s18, 0
    %p191 = por %p189, %p190
    %p192 = scmp.ne.s32.totalorder %s178, %s179
    %p193 = scmp.eq.s32.totalorder %s19, 1
    %p194 = por %p192, %p193
    %p196 = scmp.ne.s32.totalorder %s179, %s195
    %p197 = scmp.eq.s32.totalorder %s19, 0
    %p198 = por %p196, %p197
    %p199 = scmp.le.s32.totalorder 1, %s13
    %p200 = scmp.lt.s32.totalorder %s13, 3
    %p201 = pnand %p199, %p200
    %p202 = pneg %p201
    // Predicated region
    $region9: #{conv_block_forward.1} parent=5 // pred_check
      _
    $region10: #{conv_block_forward.1} parent=5 // pred_check_branch
      %204 = sbr.rel (%p201) target = $region12
    $region11: #{conv_block_forward.1} parent=5 // pred_region
      %s205 = ssub.s32 %s13, 1
      // Predicated region
      $region13: #{conv_block_forward.1} parent=11 // pred_check
        %p206 = pneg %p60
      $region14: #{conv_block_forward.1} parent=11 // pred_check_branch
        %208 = sbr.rel (%p206) target = $region16
      $region15: #{conv_block_forward.1} parent=11 // pred_region
        _
      $region16: #{conv_block_forward.1} parent=11 // pred_fallthru
        _
      // Predicated region
      $region17: #{conv_block_forward.1} parent=11 // pred_check
        %p209 = pneg %p81
      $region18: #{conv_block_forward.1} parent=11 // pred_check_branch
        %211 = sbr.rel (%p209) target = $region20
      $region19: #{conv_block_forward.1} parent=11 // pred_region
        _
      $region20: #{conv_block_forward.1} parent=11 // pred_fallthru
        _
      // Predicated region
      $region21: #{conv_block_forward.1} parent=11 // pred_check
        %p212 = pneg %p102
      $region22: #{conv_block_forward.1} parent=11 // pred_check_branch
        %214 = sbr.rel (%p212) target = $region24
      $region23: #{conv_block_forward.1} parent=11 // pred_region
        _
      $region24: #{conv_block_forward.1} parent=11 // pred_fallthru
        _
      // Predicated region
      $region25: #{conv_block_forward.1} parent=11 // pred_check
        %p215 = pneg %p123
      $region26: #{conv_block_forward.1} parent=11 // pred_check_branch
        %217 = sbr.rel (%p215) target = $region28
      $region27: #{conv_block_forward.1} parent=11 // pred_region
        _
      $region28: #{conv_block_forward.1} parent=11 // pred_fallthru
        _
      // Predicated region
      $region29: #{conv_block_forward.1} parent=11 // pred_check
        %p218 = pneg %p144
      $region30: #{conv_block_forward.1} parent=11 // pred_check_branch
        %220 = sbr.rel (%p218) target = $region32
      $region31: #{conv_block_forward.1} parent=11 // pred_region
        _
      $region32: #{conv_block_forward.1} parent=11 // pred_fallthru
        _
      // Predicated region
      $region33: #{conv_block_forward.1} parent=11 // pred_check
        %p221 = pneg %p165
      $region34: #{conv_block_forward.1} parent=11 // pred_check_branch
        %223 = sbr.rel (%p221) target = $region36
      $region35: #{conv_block_forward.1} parent=11 // pred_region
        _
      $region36: #{conv_block_forward.1} parent=11 // pred_fallthru
        _
    $region12: #{conv_block_forward.1} parent=5 // pred_fallthru
      _
    %p224 = scmp.lt.s32.totalorder %s13, 2
    // Predicated region
    $region37: #{conv_block_forward.1} parent=5 // pred_check
      %p225 = pneg %p224
    $region38: #{conv_block_forward.1} parent=5 // pred_check_branch
      %227 = sbr.rel (%p225) target = $region40
    $region39: #{conv_block_forward.1} parent=5 // pred_region
      // Predicated region
      $region41: #{conv_block_forward.1} parent=39 // pred_check
        %p228 = pneg %p33
      $region42: #{conv_block_forward.1} parent=39 // pred_check_branch
        %230 = sbr.rel (%p228) target = $region44
      $region43: #{conv_block_forward.1} parent=39 // pred_region
        %p231 = scmp.lt.s32.totalorder %s13, 1
        %s232 = scalar_select %p231, %s13, 1
        %s233 = smul.addr %s232, 4
        %s234 = smul.addr %s233, 4
        %s235 = scalar_lea.vmem %s0, %s234
      $region44: #{conv_block_forward.1} parent=39 // pred_fallthru
        _
    $region40: #{conv_block_forward.1} parent=5 // pred_fallthru
      _
    %p236 = scmp.le.s32.totalorder 1, %s13
    %p237 = scmp.lt.s32.totalorder %s13, 3
    %p238 = pnand %p236, %p237
    %p239 = pneg %p238
    // Predicated region
    $region45: #{conv_block_forward.1} parent=5 // pred_check
      _
    $region46: #{conv_block_forward.1} parent=5 // pred_check_branch
      %241 = sbr.rel (%p238) target = $region48
    $region47: #{conv_block_forward.1} parent=5 // pred_region
      %s242 = ssub.s32 %s13, 1
      %p243 = scmp.lt.s32.totalorder %s18, 1
      %s244 = scalar_select %p243, %s18, 1
      %s245 = smul.addr %s244, 4
      %s246 = smul.addr %s245, 4
      %s247 = scalar_lea.vmem %s0, %s246
      %p248 = pneg %p39
      %p249 = pneg %p36
      %p250 = pneg %p60
      %p251 = pneg %p57
      %p252 = pneg %p81
      %p253 = pneg %p78
      %p254 = pneg %p102
      %p255 = pneg %p99
      %p256 = pneg %p123
      %p257 = pneg %p120
      %p258 = pneg %p144
      %p259 = pneg %p141
      %p260 = pneg %p165
      %p261 = pneg %p162
      %p262 = pneg %p191
      %p263 = pneg %p188
      %p264 = scmp.lt.s32.totalorder %s18, 1
      %s265 = scalar_select %p264, %s18, 1
      %s266 = smul.addr %s265, 8
      %s267 = scalar_lea.vmem %s7, %s266
      %p268 = scmp.lt.s32.totalorder %s18, 1
      %s269 = scalar_select %p268, %s18, 1
      %s270 = smul.addr %s269, 4
      %s271 = smul.addr %s270, 4
      %s272 = scalar_lea.vmem %s0, %s271
      %p273 = scmp.lt.s32.totalorder %s18, 1
      %s274 = scalar_select %p273, %s18, 1
      %s275 = smul.addr %s274, 8
      %s276 = scalar_lea.vmem %s7, %s275
      %v277 = vld [vmem:[%s272] sm:$0xff]
      %v278 = vld [vmem:[%s272 + $0x8] sm:$0xff]
      %v281 = vcombine.high %v277, %v277
      %v283 = vcombine.low %v277, %v277
      %v284 = vcombine.low %v278, %v278
      %285 = vrot.lane.b32.xlu0 %v283, 127
      %v286 = vpop.permute.xlu0 %285
      %287 = vrot.lane.b32.xlu0 %v277, 127
      %v288 = vpop.permute.xlu0 %287
      %289 = vrot.lane.b32.xlu0 %v284, 127
      %v290 = vpop.permute.xlu0 %289
      %291 = vrot.lane.b32.xlu0 %v278, 127
      %v292 = vpop.permute.xlu0 %291
      %vm293 = vcmask 1039360
      %v294 = vsel %vm293, %v286, %v288
      %v295 = vsel %vm293, %v288, %v290
      %v296 = vsel %vm293, %v290, %v292
      %v300 = vcombine.high %v278, %v278
      %301 = vrot.lane.b32.xlu0 %v277, 126
      %v302 = vpop.permute.xlu0 %301
      %303 = vrot.lane.b32.xlu0 %v281, 126
      %v304 = vpop.permute.xlu0 %303
      %305 = vrot.lane.b32.xlu0 %v278, 126
      %v306 = vpop.permute.xlu0 %305
      %307 = vrot.lane.b32.xlu0 %v300, 126
      %v308 = vpop.permute.xlu0 %307
      %vm309 = vcmask 1031168
      %v310 = vsel %vm309, %v302, %v304
      %v311 = vsel %vm309, %v304, %v306
      %v312 = vsel %vm309, %v306, %v308
      %316 = vrot.lane.b32.xlu0 %v283, 104
      %v317 = vpop.permute.xlu0 %316
      %318 = vrot.lane.b32.xlu0 %v277, 104
      %v319 = vpop.permute.xlu0 %318
      %320 = vrot.lane.b32.xlu0 %v284, 104
      %v321 = vpop.permute.xlu0 %320
      %322 = vrot.lane.b32.xlu0 %v278, 104
      %v323 = vpop.permute.xlu0 %322
      %vm324 = vcmask 850944
      %v325 = vsel %vm324, %v317, %v319
      %v326 = vsel %vm324, %v319, %v321
      %v327 = vsel %vm324, %v321, %v323
      %331 = vrot.lane.b32.xlu0 %v277, 103
      %v332 = vpop.permute.xlu0 %331
      %333 = vrot.lane.b32.xlu0 %v281, 103
      %v334 = vpop.permute.xlu0 %333
      %335 = vrot.lane.b32.xlu0 %v278, 103
      %v336 = vpop.permute.xlu0 %335
      %337 = vrot.lane.b32.xlu0 %v300, 103
      %v338 = vpop.permute.xlu0 %337
      %vm339 = vcmask 842752
      %v340 = vsel %vm339, %v332, %v334
      %v341 = vsel %vm339, %v334, %v336
      %v342 = vsel %vm339, %v336, %v338
      %346 = vrot.lane.b32.xlu0 %v283, 102
      %v347 = vpop.permute.xlu0 %346
      %348 = vrot.lane.b32.xlu0 %v277, 102
      %v349 = vpop.permute.xlu0 %348
      %350 = vrot.lane.b32.xlu0 %v284, 102
      %v351 = vpop.permute.xlu0 %350
      %352 = vrot.lane.b32.xlu0 %v278, 102
      %v353 = vpop.permute.xlu0 %352
      %vm354 = vcmask 834560
      %v355 = vsel %vm354, %v347, %v349
      %v356 = vsel %vm354, %v349, %v351
      %v357 = vsel %vm354, %v351, %v353
      %361 = vrot.lane.b32.xlu0 %v277, 80
      %v362 = vpop.permute.xlu0 %361
      %363 = vrot.lane.b32.xlu0 %v281, 80
      %v364 = vpop.permute.xlu0 %363
      %365 = vrot.lane.b32.xlu0 %v278, 80
      %v366 = vpop.permute.xlu0 %365
      %367 = vrot.lane.b32.xlu0 %v300, 80
      %v368 = vpop.permute.xlu0 %367
      %vm369 = vcmask 654336
      %v370 = vsel %vm369, %v362, %v364
      %v371 = vsel %vm369, %v364, %v366
      %v372 = vsel %vm369, %v366, %v368
      %376 = vrot.lane.b32.xlu0 %v283, 79
      %v377 = vpop.permute.xlu0 %376
      %378 = vrot.lane.b32.xlu0 %v277, 79
      %v379 = vpop.permute.xlu0 %378
      %380 = vrot.lane.b32.xlu0 %v284, 79
      %v381 = vpop.permute.xlu0 %380
      %382 = vrot.lane.b32.xlu0 %v278, 79
      %v383 = vpop.permute.xlu0 %382
      %vm384 = vcmask 646144
      %v385 = vsel %vm384, %v377, %v379
      %v386 = vsel %vm384, %v379, %v381
      %v387 = vsel %vm384, %v381, %v383
      %391 = vrot.lane.b32.xlu0 %v277, 78
      %v392 = vpop.permute.xlu0 %391
      %393 = vrot.lane.b32.xlu0 %v281, 78
      %v394 = vpop.permute.xlu0 %393
      %395 = vrot.lane.b32.xlu0 %v278, 78
      %v396 = vpop.permute.xlu0 %395
      %397 = vrot.lane.b32.xlu0 %v300, 78
      %v398 = vpop.permute.xlu0 %397
      %vm399 = vcmask 637952
      %v400 = vsel %vm399, %v392, %v394
      %v401 = vsel %vm399, %v394, %v396
      %v402 = vsel %vm399, %v396, %v398
      %vm403 = vcmask 1043456
      %v404 = vsel %vm403, %v277, %v294
      %v405 = vsel %vm403, %v281, %v295
      %v406 = vsel %vm403, %v278, %v296
      %v407 = vsel %vm403, %v310, %v325
      %v408 = vsel %vm403, %v311, %v326
      %v409 = vsel %vm403, %v312, %v327
      %v410 = vsel %vm403, %v340, %v355
      %v411 = vsel %vm403, %v341, %v356
      %v412 = vsel %vm403, %v342, %v357
      %v413 = vsel %vm403, %v370, %v385
      %v414 = vsel %vm403, %v371, %v386
      %v415 = vsel %vm403, %v372, %v387
      %v416 = vld [vmem:[%s1] sm:$0xff]
      %v417 = vld [vmem:[%s2] sm:$0xff]
      %419 = vset.pattern.permute.xlu0 0
      %420 = vperm.xlu0 %419, %v417
      %v421 = vpop.permute.xlu0 %420
      %vm423 = vcmask 293888
      %v425 = vsel %vm423, %v416, 0
      %v427 = vsel %vm403, %v400, 0
      %v429 = vsel %vm403, %v401, 0
      %v431 = vsel %vm403, %v402, 0
      %433 = vmatprep.subr.mxu0 %v405
      %434 = vmatpush1.msra.mxu0 %v404
      %435 = vmatprep.subr.mxu0 %v408
      %436 = vmatpush1.msra.mxu0 %v407
      %437 = vmatprep.subr.mxu0 %v411
      %438 = vmatpush1.msra.mxu0 %v410
      %439 = vmatprep.subr.mxu0 %v414
      %440 = vmatpush1.msra.mxu0 %v413
      %441 = vmatprep.subr.mxu0 %v429
      %442 = vmatpush1.msra.mxu0 %v427
      %443 = vmatprep.subr.mxu0 0.0
      %444 = vmatpush1.msra.mxu0 0.0
      %445 = vmatprep.subr.mxu0 0.0
      %446 = vmatpush1.msra.mxu0 0.0
      %447 = vmatprep.subr.mxu0 0.0
      %448 = vmatpush1.msra.mxu0 0.0
      %449 = vmatprep.subr.mxu0 0.0
      %450 = vmatpush1.msra.mxu0 0.0
      %451 = vmatprep.subr.mxu0 0.0
      %452 = vmatpush1.msra.mxu0 0.0
      %453 = vmatprep.subr.mxu0 0.0
      %454 = vmatpush1.msra.mxu0 0.0
      %455 = vmatprep.subr.mxu0 0.0
      %456 = vmatpush1.msra.mxu0 0.0
      %457 = vmatprep.subr.mxu0 0.0
      %458 = vmatpush1.msra.mxu0 0.0
      %459 = vmatprep.subr.mxu0 0.0
      %460 = vmatpush1.msra.mxu0 0.0
      %461 = vmatprep.subr.mxu0 0.0
      %462 = vmatpush1.msra.mxu0 0.0
      %463 = vmatprep.subr.mxu0 0.0
      %464 = vmatpush1.msra.mxu0 0.0
      %465 = vmatprep.subr.mxu0 0.0
      %466 = vmatpush1.msra.mxu0 0.0
      %467 = vmatprep.subr.mxu0 0.0
      %468 = vmatpush1.msra.mxu0 0.0
      %469 = vmatprep.subr.mxu0 0.0
      %470 = vmatpush1.msra.mxu0 0.0
      %471 = vmatprep.subr.mxu0 0.0
      %472 = vmatpush1.msra.mxu0 0.0
      %473 = vmatprep.subr.mxu0 0.0
      %474 = vmatpush1.msra.mxu0 0.0
      %475 = vmatprep.subr.mxu0 0.0
      %476 = vmatpush1.msra.mxu0 0.0
      %477 = vmatprep.subr.mxu0 0.0
      %478 = vmatpush1.msra.mxu0 0.0
      %479 = vmatprep.subr.mxu0 0.0
      %480 = vmatpush1.msra.mxu0 0.0
      %481 = vmatprep.subr.mxu0 0.0
      %482 = vmatpush1.msra.mxu0 0.0
      %483 = vmatprep.subr.mxu0 0.0
      %484 = vmatpush1.msra.mxu0 0.0
      %485 = vmatprep.subr.mxu0 0.0
      %486 = vmatpush1.msra.mxu0 0.0
      %487 = vmatprep.subr.mxu0 0.0
      %488 = vmatpush1.msra.mxu0 0.0
      %489 = vmatprep.subr.mxu0 0.0
      %490 = vmatpush1.msra.mxu0 0.0
      %491 = vmatprep.subr.mxu0 0.0
      %492 = vmatpush1.msra.mxu0 0.0
      %493 = vmatprep.subr.mxu0 0.0
      %494 = vmatpush1.msra.mxu0 0.0
      %495 = vmatprep.subr.mxu0 0.0
      %496 = vmatpush1.msra.mxu0 0.0
      %497 = vmatprep.mubr.f32.mxu0 0.0
      %498 = vmatmul.mubr.f32.gmra.mrb[0].mxu0 %v425
      %v499 = vpop.f32.mrb[0].mxu0
      %v500 = vadd.f32 %v421, %v499
      %v501 = vpop.f32.mrb[0].mxu0
      %v502 = vadd.f32 %v421, %v501
      %503 = vdwg.mxu0
      %504 = vmatprep.subr.mxu0 0.0
      %505 = vmatpush1.msra.mxu0 %v406
      %506 = vmatprep.subr.mxu0 0.0
      %507 = vmatpush1.msra.mxu0 %v409
      %508 = vmatprep.subr.mxu0 0.0
      %509 = vmatpush1.msra.mxu0 %v412
      %510 = vmatprep.subr.mxu0 0.0
      %511 = vmatpush1.msra.mxu0 %v415
      %512 = vmatprep.subr.mxu0 0.0
      %513 = vmatpush1.msra.mxu0 %v431
      %514 = vmatprep.subr.mxu0 0.0
      %515 = vmatpush1.msra.mxu0 0.0
      %516 = vmatprep.subr.mxu0 0.0
      %517 = vmatpush1.msra.mxu0 0.0
      %518 = vmatprep.subr.mxu0 0.0
      %519 = vmatpush1.msra.mxu0 0.0
      %520 = vmatprep.subr.mxu0 0.0
      %521 = vmatpush1.msra.mxu0 0.0
      %522 = vmatprep.subr.mxu0 0.0
      %523 = vmatpush1.msra.mxu0 0.0
      %524 = vmatprep.subr.mxu0 0.0
      %525 = vmatpush1.msra.mxu0 0.0
      %526 = vmatprep.subr.mxu0 0.0
      %527 = vmatpush1.msra.mxu0 0.0
      %528 = vmatprep.subr.mxu0 0.0
      %529 = vmatpush1.msra.mxu0 0.0
      %530 = vmatprep.subr.mxu0 0.0
      %531 = vmatpush1.msra.mxu0 0.0
      %532 = vmatprep.subr.mxu0 0.0
      %533 = vmatpush1.msra.mxu0 0.0
      %534 = vmatprep.subr.mxu0 0.0
      %535 = vmatpush1.msra.mxu0 0.0
      %536 = vmatprep.subr.mxu0 0.0
      %537 = vmatpush1.msra.mxu0 0.0
      %538 = vmatprep.subr.mxu0 0.0
      %539 = vmatpush1.msra.mxu0 0.0
      %540 = vmatprep.subr.mxu0 0.0
      %541 = vmatpush1.msra.mxu0 0.0
      %542 = vmatprep.subr.mxu0 0.0
      %543 = vmatpush1.msra.mxu0 0.0
      %544 = vmatprep.subr.mxu0 0.0
      %545 = vmatpush1.msra.mxu0 0.0
      %546 = vmatprep.subr.mxu0 0.0
      %547 = vmatpush1.msra.mxu0 0.0
      %548 = vmatprep.subr.mxu0 0.0
      %549 = vmatpush1.msra.mxu0 0.0
      %550 = vmatprep.subr.mxu0 0.0
      %551 = vmatpush1.msra.mxu0 0.0
      %552 = vmatprep.subr.mxu0 0.0
      %553 = vmatpush1.msra.mxu0 0.0
      %554 = vmatprep.subr.mxu0 0.0
      %555 = vmatpush1.msra.mxu0 0.0
      %556 = vmatprep.subr.mxu0 0.0
      %557 = vmatpush1.msra.mxu0 0.0
      %558 = vmatprep.subr.mxu0 0.0
      %559 = vmatpush1.msra.mxu0 0.0
      %560 = vmatprep.subr.mxu0 0.0
      %561 = vmatpush1.msra.mxu0 0.0
      %562 = vmatprep.subr.mxu0 0.0
      %563 = vmatpush1.msra.mxu0 0.0
      %564 = vmatprep.subr.mxu0 0.0
      %565 = vmatpush1.msra.mxu0 0.0
      %566 = vmatprep.subr.mxu0 0.0
      %567 = vmatpush1.msra.mxu0 0.0
      %568 = vmatprep.mubr.f32.mxu0 0.0
      %569 = vmatmul.mubr.f32.gmra.mrb[0].mxu0 %v425
      %v570 = vpop.f32.mrb[0].mxu0
      %v571 = vadd.f32 %v421, %v570
      %v572 = vpop.f32.mrb[0].mxu0
      %573 = vdwg.mxu0
      %v574 = vmax.f32 %v500, 0.0
      %v575 = vmax.f32 %v502, 0.0
      %v576 = vmax.f32 %v571, 0.0
      %v577 = vld [vmem:[%s5] sm:$0x7]
      %v579 = vlaneseq
      %v580 = vshrl.u32 %v579, 7
      %v581 = vsub.s32 0, %v580
      %v582 = vrot.slane %v577, %v581
      %v583 = vlaneseq
      %v584 = vshrl.u32 %v583, 7
      %v585 = vsub.s32 1, %v584
      %v586 = vrot.slane %v577, %v585
      %v587 = vlaneseq
      %v588 = vshrl.u32 %v587, 7
      %v589 = vsub.s32 2, %v588
      %v590 = vrot.slane %v577, %v589
      %v594 = vmul.f32 %v574, %v582
      %v595 = vmul.f32 %v575, %v586
      %v596 = vmul.f32 %v576, %v590
      %597 = vst [vmem:[#allocation2] sm:$0xff] 0.0
      %598 = vst [vmem:[#allocation2 + $0x8] sm:$0xff] 0.0
      %599 = vst [vmem:[#allocation2 + $0x10] sm:$0xff] 0.0
      %vm600 = vcmask 588800
      %601 = vst.msk [vmem:[#allocation2 + $0x18] sm:$0xff] %vm600, 0.0
      %605 = vrot.lane.b32.xlu0 %v594, 25
      %v606 = vpop.permute.xlu0 %605
      %607 = vrot.lane.b32.xlu0 %v595, 25
      %v608 = vpop.permute.xlu0 %607
      %609 = vrot.lane.b32.xlu0 %v596, 25
      %v610 = vpop.permute.xlu0 %609
      %vm611 = vcmask 203776
      %v612 = vsel %vm611, %v606, %v608
      %v613 = vsel %vm611, %v608, %v610
      %vm618 = vcmask 1047752
      %619 = vst.msk [vmem:[#allocation2] sm:$0xff] %vm618, %v606
      %620 = vst [vmem:[#allocation2 + $0x8] sm:$0xff] %v612
      %621 = vst [vmem:[#allocation2 + $0x10] sm:$0xff] %v613
      %622 = vst.msk [vmem:[#allocation2 + $0x18] sm:$0xff] %vm611, %v610
      %v623 = vld [vmem:[#allocation2] sm:$0xff]
      %v624 = vld [vmem:[#allocation2 + $0x8] sm:$0xff]
      %v625 = vld [vmem:[#allocation2 + $0x10] sm:$0xff]
      %v626 = vld [vmem:[#allocation2 + $0x18] sm:$0xff]
      %631 = vrot.lane.b32.xlu0 %v623, 127
      %v632 = vpop.permute.xlu0 %631
      %633 = vrot.lane.b32.xlu0 %v624, 127
      %v634 = vpop.permute.xlu0 %633
      %635 = vrot.lane.b32.xlu0 %v625, 127
      %v636 = vpop.permute.xlu0 %635
      %637 = vrot.lane.b32.xlu0 %v626, 127
      %v638 = vpop.permute.xlu0 %637
      %v639 = vsel %vm293, %v632, %v634
      %v640 = vsel %vm293, %v634, %v636
      %v641 = vsel %vm293, %v636, %v638
      %645 = vrot.lane.b32.xlu0 %v623, 126
      %v646 = vpop.permute.xlu0 %645
      %647 = vrot.lane.b32.xlu0 %v624, 126
      %v648 = vpop.permute.xlu0 %647
      %649 = vrot.lane.b32.xlu0 %v625, 126
      %v650 = vpop.permute.xlu0 %649
      %651 = vrot.lane.b32.xlu0 %v626, 126
      %v652 = vpop.permute.xlu0 %651
      %v653 = vsel %vm309, %v646, %v648
      %v654 = vsel %vm309, %v648, %v650
      %v655 = vsel %vm309, %v650, %v652
      %659 = vrot.lane.b32.xlu0 %v623, 104
      %v660 = vpop.permute.xlu0 %659
      %661 = vrot.lane.b32.xlu0 %v624, 104
      %v662 = vpop.permute.xlu0 %661
      %663 = vrot.lane.b32.xlu0 %v625, 104
      %v664 = vpop.permute.xlu0 %663
      %665 = vrot.lane.b32.xlu0 %v626, 104
      %v666 = vpop.permute.xlu0 %665
      %v667 = vsel %vm324, %v660, %v662
      %v668 = vsel %vm324, %v662, %v664
      %v669 = vsel %vm324, %v664, %v666
      %673 = vrot.lane.b32.xlu0 %v623, 103
      %v674 = vpop.permute.xlu0 %673
      %675 = vrot.lane.b32.xlu0 %v624, 103
      %v676 = vpop.permute.xlu0 %675
      %677 = vrot.lane.b32.xlu0 %v625, 103
      %v678 = vpop.permute.xlu0 %677
      %679 = vrot.lane.b32.xlu0 %v626, 103
      %v680 = vpop.permute.xlu0 %679
      %v681 = vsel %vm339, %v674, %v676
      %v682 = vsel %vm339, %v676, %v678
      %v683 = vsel %vm339, %v678, %v680
      %687 = vrot.lane.b32.xlu0 %v623, 102
      %v688 = vpop.permute.xlu0 %687
      %689 = vrot.lane.b32.xlu0 %v624, 102
      %v690 = vpop.permute.xlu0 %689
      %691 = vrot.lane.b32.xlu0 %v625, 102
      %v692 = vpop.permute.xlu0 %691
      %693 = vrot.lane.b32.xlu0 %v626, 102
      %v694 = vpop.permute.xlu0 %693
      %v695 = vsel %vm354, %v688, %v690
      %v696 = vsel %vm354, %v690, %v692
      %v697 = vsel %vm354, %v692, %v694
      %701 = vrot.lane.b32.xlu0 %v623, 80
      %v702 = vpop.permute.xlu0 %701
      %703 = vrot.lane.b32.xlu0 %v624, 80
      %v704 = vpop.permute.xlu0 %703
      %705 = vrot.lane.b32.xlu0 %v625, 80
      %v706 = vpop.permute.xlu0 %705
      %707 = vrot.lane.b32.xlu0 %v626, 80
      %v708 = vpop.permute.xlu0 %707
      %v709 = vsel %vm369, %v702, %v704
      %v710 = vsel %vm369, %v704, %v706
      %v711 = vsel %vm369, %v706, %v708
      %715 = vrot.lane.b32.xlu0 %v623, 79
      %v716 = vpop.permute.xlu0 %715
      %717 = vrot.lane.b32.xlu0 %v624, 79
      %v718 = vpop.permute.xlu0 %717
      %719 = vrot.lane.b32.xlu0 %v625, 79
      %v720 = vpop.permute.xlu0 %719
      %721 = vrot.lane.b32.xlu0 %v626, 79
      %v722 = vpop.permute.xlu0 %721
      %v723 = vsel %vm384, %v716, %v718
      %v724 = vsel %vm384, %v718, %v720
      %v725 = vsel %vm384, %v720, %v722
      %729 = vrot.lane.b32.xlu0 %v623, 78
      %v730 = vpop.permute.xlu0 %729
      %731 = vrot.lane.b32.xlu0 %v624, 78
      %v732 = vpop.permute.xlu0 %731
      %733 = vrot.lane.b32.xlu0 %v625, 78
      %v734 = vpop.permute.xlu0 %733
      %735 = vrot.lane.b32.xlu0 %v626, 78
      %v736 = vpop.permute.xlu0 %735
      %v737 = vsel %vm399, %v730, %v732
      %v738 = vsel %vm399, %v732, %v734
      %v739 = vsel %vm399, %v734, %v736
      %v743 = vld [vmem:[%s3] sm:$0xff]
      %v744 = vld [vmem:[%s4] sm:$0xff]
      %746 = vset.pattern.permute.xlu0 0
      %747 = vperm.xlu0 %746, %v744
      %v748 = vpop.permute.xlu0 %747
      %v751 = vsel %vm600, %v743, 0
      %753 = vmatprep.subr.mxu0 %v624
      %754 = vmatpush1.msra.mxu0 %v623
      %755 = vmatprep.subr.mxu0 %v640
      %756 = vmatpush1.msra.mxu0 %v639
      %757 = vmatprep.subr.mxu0 %v654
      %758 = vmatpush1.msra.mxu0 %v653
      %759 = vmatprep.subr.mxu0 %v668
      %760 = vmatpush1.msra.mxu0 %v667
      %761 = vmatprep.subr.mxu0 %v682
      %762 = vmatpush1.msra.mxu0 %v681
      %763 = vmatprep.subr.mxu0 %v696
      %764 = vmatpush1.msra.mxu0 %v695
      %765 = vmatprep.subr.mxu0 %v710
      %766 = vmatpush1.msra.mxu0 %v709
      %767 = vmatprep.subr.mxu0 %v724
      %768 = vmatpush1.msra.mxu0 %v723
      %769 = vmatprep.subr.mxu0 %v738
      %770 = vmatpush1.msra.mxu0 %v737
      %771 = vmatprep.subr.mxu0 0.0
      %772 = vmatpush1.msra.mxu0 0.0
      %773 = vmatprep.subr.mxu0 0.0
      %774 = vmatpush1.msra.mxu0 0.0
      %775 = vmatprep.subr.mxu0 0.0
      %776 = vmatpush1.msra.mxu0 0.0
      %777 = vmatprep.subr.mxu0 0.0
      %778 = vmatpush1.msra.mxu0 0.0
      %779 = vmatprep.subr.mxu0 0.0
      %780 = vmatpush1.msra.mxu0 0.0
      %781 = vmatprep.subr.mxu0 0.0
      %782 = vmatpush1.msra.mxu0 0.0
      %783 = vmatprep.subr.mxu0 0.0
      %784 = vmatpush1.msra.mxu0 0.0
      %785 = vmatprep.subr.mxu0 0.0
      %786 = vmatpush1.msra.mxu0 0.0
      %787 = vmatprep.subr.mxu0 0.0
      %788 = vmatpush1.msra.mxu0 0.0
      %789 = vmatprep.subr.mxu0 0.0
      %790 = vmatpush1.msra.mxu0 0.0
      %791 = vmatprep.subr.mxu0 0.0
      %792 = vmatpush1.msra.mxu0 0.0
      %793 = vmatprep.subr.mxu0 0.0
      %794 = vmatpush1.msra.mxu0 0.0
      %795 = vmatprep.subr.mxu0 0.0
      %796 = vmatpush1.msra.mxu0 0.0
      %797 = vmatprep.subr.mxu0 0.0
      %798 = vmatpush1.msra.mxu0 0.0
      %799 = vmatprep.subr.mxu0 0.0
      %800 = vmatpush1.msra.mxu0 0.0
      %801 = vmatprep.subr.mxu0 0.0
      %802 = vmatpush1.msra.mxu0 0.0
      %803 = vmatprep.subr.mxu0 0.0
      %804 = vmatpush1.msra.mxu0 0.0
      %805 = vmatprep.subr.mxu0 0.0
      %806 = vmatpush1.msra.mxu0 0.0
      %807 = vmatprep.subr.mxu0 0.0
      %808 = vmatpush1.msra.mxu0 0.0
      %809 = vmatprep.subr.mxu0 0.0
      %810 = vmatpush1.msra.mxu0 0.0
      %811 = vmatprep.subr.mxu0 0.0
      %812 = vmatpush1.msra.mxu0 0.0
      %813 = vmatprep.subr.mxu0 0.0
      %814 = vmatpush1.msra.mxu0 0.0
      %815 = vmatprep.subr.mxu0 0.0
      %816 = vmatpush1.msra.mxu0 0.0
      %817 = vmatprep.mubr.f32.mxu0 0.0
      %818 = vmatmul.mubr.f32.gmra.mrb[0].mxu0 %v751
      %v819 = vpop.f32.mrb[0].mxu0
      %v820 = vadd.f32 %v748, %v819
      %v821 = vpop.f32.mrb[0].mxu0
      %v822 = vadd.f32 %v748, %v821
      %823 = vdwg.mxu0
      %824 = vmatprep.subr.mxu0 0.0
      %825 = vmatpush1.msra.mxu0 %v625
      %826 = vmatprep.subr.mxu0 0.0
      %827 = vmatpush1.msra.mxu0 %v641
      %828 = vmatprep.subr.mxu0 0.0
      %829 = vmatpush1.msra.mxu0 %v655
      %830 = vmatprep.subr.mxu0 0.0
      %831 = vmatpush1.msra.mxu0 %v669
      %832 = vmatprep.subr.mxu0 0.0
      %833 = vmatpush1.msra.mxu0 %v683
      %834 = vmatprep.subr.mxu0 0.0
      %835 = vmatpush1.msra.mxu0 %v697
      %836 = vmatprep.subr.mxu0 0.0
      %837 = vmatpush1.msra.mxu0 %v711
      %838 = vmatprep.subr.mxu0 0.0
      %839 = vmatpush1.msra.mxu0 %v725
      %840 = vmatprep.subr.mxu0 0.0
      %841 = vmatpush1.msra.mxu0 %v739
      %842 = vmatprep.subr.mxu0 0.0
      %843 = vmatpush1.msra.mxu0 0.0
      %844 = vmatprep.subr.mxu0 0.0
      %845 = vmatpush1.msra.mxu0 0.0
      %846 = vmatprep.subr.mxu0 0.0
      %847 = vmatpush1.msra.mxu0 0.0
      %848 = vmatprep.subr.mxu0 0.0
      %849 = vmatpush1.msra.mxu0 0.0
      %850 = vmatprep.subr.mxu0 0.0
      %851 = vmatpush1.msra.mxu0 0.0
      %852 = vmatprep.subr.mxu0 0.0
      %853 = vmatpush1.msra.mxu0 0.0
      %854 = vmatprep.subr.mxu0 0.0
      %855 = vmatpush1.msra.mxu0 0.0
      %856 = vmatprep.subr.mxu0 0.0
      %857 = vmatpush1.msra.mxu0 0.0
      %858 = vmatprep.subr.mxu0 0.0
      %859 = vmatpush1.msra.mxu0 0.0
      %860 = vmatprep.subr.mxu0 0.0
      %861 = vmatpush1.msra.mxu0 0.0
      %862 = vmatprep.subr.mxu0 0.0
      %863 = vmatpush1.msra.mxu0 0.0
      %864 = vmatprep.subr.mxu0 0.0
      %865 = vmatpush1.msra.mxu0 0.0
      %866 = vmatprep.subr.mxu0 0.0
      %867 = vmatpush1.msra.mxu0 0.0
      %868 = vmatprep.subr.mxu0 0.0
      %869 = vmatpush1.msra.mxu0 0.0
      %870 = vmatprep.subr.mxu0 0.0
      %871 = vmatpush1.msra.mxu0 0.0
      %872 = vmatprep.subr.mxu0 0.0
      %873 = vmatpush1.msra.mxu0 0.0
      %874 = vmatprep.subr.mxu0 0.0
      %875 = vmatpush1.msra.mxu0 0.0
      %876 = vmatprep.subr.mxu0 0.0
      %877 = vmatpush1.msra.mxu0 0.0
      %878 = vmatprep.subr.mxu0 0.0
      %879 = vmatpush1.msra.mxu0 0.0
      %880 = vmatprep.subr.mxu0 0.0
      %881 = vmatpush1.msra.mxu0 0.0
      %882 = vmatprep.subr.mxu0 0.0
      %883 = vmatpush1.msra.mxu0 0.0
      %884 = vmatprep.subr.mxu0 0.0
      %885 = vmatpush1.msra.mxu0 0.0
      %886 = vmatprep.subr.mxu0 0.0
      %887 = vmatpush1.msra.mxu0 0.0
      %888 = vmatprep.mubr.f32.mxu0 0.0
      %889 = vmatmul.mubr.f32.gmra.mrb[0].mxu0 %v751
      %v890 = vpop.f32.mrb[0].mxu0
      %v891 = vadd.f32 %v748, %v890
      %v892 = vpop.f32.mrb[0].mxu0
      %893 = vdwg.mxu0
      %v894 = vmax.f32 %v820, 0.0
      %v895 = vmax.f32 %v822, 0.0
      %v896 = vmax.f32 %v891, 0.0
      %897 = vrot.lane.b32.xlu0 %v894, 127
      %v898 = vpop.permute.xlu0 %897
      %899 = vrot.lane.b32.xlu0 %v895, 127
      %v900 = vpop.permute.xlu0 %899
      %901 = vrot.lane.b32.xlu0 %v896, 127
      %v902 = vpop.permute.xlu0 %901
      %v903 = vlaneseq
      %v904 = vand.u32 %v903, 127
      %vm905 = vcmp.lt.s32.totalorder %v904, 127
      %v906 = vsel %vm905, %v900, %v902
      %v907 = vsel %vm905, %v898, %v900
      %v908 = vsel %vm905, %v902, %v898
      %v909 = vmax.f32 %v894, %v907
      %v910 = vmax.f32 %v895, %v906
      %v911 = vmax.f32 %v896, %v908
      %912 = vrot.lane.b32.xlu0 %v909, 104
      %v913 = vpop.permute.xlu0 %912
      %914 = vrot.lane.b32.xlu0 %v910, 104
      %v915 = vpop.permute.xlu0 %914
      %916 = vrot.lane.b32.xlu0 %v911, 104
      %v917 = vpop.permute.xlu0 %916
      %vm918 = vcmp.lt.s32.totalorder %v904, 104
      %v919 = vsel %vm918, %v915, %v917
      %v920 = vsel %vm918, %v913, %v915
      %v921 = vsel %vm918, %v917, %v913
      %v922 = vmax.f32 %v909, %v920
      %v923 = vmax.f32 %v910, %v919
      %v924 = vmax.f32 %v911, %v921
      %v925 = vld [vmem:[%s6] sm:$0xff]
      %v926 = vld [vmem:[%s6 + $0x8] sm:$0xff]
      %v927 = vld [vmem:[%s6 + $0x10] sm:$0xff]
      %v928 = vld [vmem:[%s6 + $0x18] sm:$0xff]
      %v929 = vld [vmem:[%s6 + $0x20] sm:$0xff]
      %v930 = vld [vmem:[%s6 + $0x28] sm:$0xff]
      %v931 = vld [vmem:[%s6 + $0x30] sm:$0xff]
      %v932 = vld [vmem:[%s6 + $0x38] sm:$0xff]
      %v933 = vld [vmem:[%s6 + $0x40] sm:$0xff]
      %v934 = vld [vmem:[%s6 + $0x48] sm:$0xff]
      %v935 = vld [vmem:[%s6 + $0x50] sm:$0xff]
      %v936 = vld [vmem:[%s6 + $0x58] sm:$0xff]
      %v937 = vld [vmem:[%s6 + $0x60] sm:$0xff]
      %v938 = vld [vmem:[%s6 + $0x68] sm:$0xff]
      %v939 = vld [vmem:[%s6 + $0x70] sm:$0xff]
      %v940 = vld [vmem:[%s6 + $0x78] sm:$0xff]
      %v941 = vld [vmem:[%s6 + $0x80] sm:$0xff]
      %v942 = vld [vmem:[%s6 + $0x88] sm:$0xff]
      %v943 = vld [vmem:[%s6 + $0x90] sm:$0xff]
      %v944 = vld [vmem:[%s6 + $0x98] sm:$0xff]
      %v945 = vld [vmem:[%s6 + $0xa0] sm:$0xff]
      %v946 = vld [vmem:[%s6 + $0xa8] sm:$0xff]
      %v947 = vld [vmem:[%s6 + $0xb0] sm:$0xff]
      %v948 = vld [vmem:[%s6 + $0xb8] sm:$0xff]
      %v949 = vld [vmem:[%s6 + $0xc0] sm:$0xff]
      %v950 = vld [vmem:[%s6 + $0xc8] sm:$0xff]
      %v951 = vld [vmem:[%s6 + $0xd0] sm:$0xff]
      %v952 = vld [vmem:[%s6 + $0xd8] sm:$0xff]
      %v953 = vld [vmem:[%s6 + $0xe0] sm:$0xff]
      %v954 = vld [vmem:[%s6 + $0xe8] sm:$0xff]
      %v955 = vld [vmem:[%s6 + $0xf0] sm:$0xff]
      %v956 = vld [vmem:[%s6 + $0xf8] sm:$0xff]
      %v957 = vld [vmem:[%s6 + $0x100] sm:$0xff]
      %v958 = vld [vmem:[%s6 + $0x108] sm:$0xff]
      %v959 = vld [vmem:[%s6 + $0x110] sm:$0xff]
      %v960 = vld [vmem:[%s6 + $0x118] sm:$0xff]
      %v961 = vld [vmem:[%s6 + $0x120] sm:$0xff]
      %v962 = vld [vmem:[%s6 + $0x128] sm:$0xff]
      %v963 = vld [vmem:[%s6 + $0x130] sm:$0xff]
      %v964 = vld [vmem:[%s6 + $0x138] sm:$0xff]
      %v965 = vld [vmem:[%s6 + $0x140] sm:$0xff]
      %v966 = vld [vmem:[%s6 + $0x148] sm:$0xff]
      %v967 = vld [vmem:[%s6 + $0x150] sm:$0xff]
      %v968 = vld [vmem:[%s6 + $0x158] sm:$0xff]
      %v969 = vld [vmem:[%s6 + $0x160] sm:$0xff]
      %v970 = vld [vmem:[%s6 + $0x168] sm:$0xff]
      %v971 = vld [vmem:[%s6 + $0x170] sm:$0xff]
      %v972 = vld [vmem:[%s6 + $0x178] sm:$0xff]
      %973 = vmatprep.subr.mxu0 0.0
      %974 = vmatpush1.msra.mxu0 %v925
      %975 = vmatprep.subr.mxu0 0.0
      %976 = vmatpush1.msra.mxu0 %v926
      %977 = vmatprep.subr.mxu0 0.0
      %978 = vmatpush1.msra.mxu0 %v927
      %979 = vmatprep.subr.mxu0 0.0
      %980 = vmatpush1.msra.mxu0 %v928
      %981 = vmatprep.subr.mxu0 0.0
      %982 = vmatpush1.msra.mxu0 %v929
      %983 = vmatprep.subr.mxu0 0.0
      %984 = vmatpush1.msra.mxu0 %v930
      %985 = vmatprep.subr.mxu0 0.0
      %986 = vmatpush1.msra.mxu0 %v931
      %987 = vmatprep.subr.mxu0 0.0
      %988 = vmatpush1.msra.mxu0 %v932
      %989 = vmatprep.subr.mxu0 0.0
      %990 = vmatpush1.msra.mxu0 %v933
      %991 = vmatprep.subr.mxu0 0.0
      %992 = vmatpush1.msra.mxu0 %v934
      %993 = vmatprep.subr.mxu0 0.0
      %994 = vmatpush1.msra.mxu0 %v935
      %995 = vmatprep.subr.mxu0 0.0
      %996 = vmatpush1.msra.mxu0 %v936
      %997 = vmatprep.subr.mxu0 0.0
      %998 = vmatpush1.msra.mxu0 %v937
      %999 = vmatprep.subr.mxu0 0.0
      %1000 = vmatpush1.msra.mxu0 %v938
      %1001 = vmatprep.subr.mxu0 0.0
      %1002 = vmatpush1.msra.mxu0 %v939
      %1003 = vmatprep.subr.mxu0 0.0
      %1004 = vmatpush1.msra.mxu0 %v940
      %1005 = vmatprep.subr.mxu0 0.0
      %1006 = vmatpush1.msra.mxu0 %v941
      %1007 = vmatprep.subr.mxu0 0.0
      %1008 = vmatpush1.msra.mxu0 %v942
      %1009 = vmatprep.subr.mxu0 0.0
      %1010 = vmatpush1.msra.mxu0 %v943
      %1011 = vmatprep.subr.mxu0 0.0
      %1012 = vmatpush1.msra.mxu0 %v944
      %1013 = vmatprep.subr.mxu0 0.0
      %1014 = vmatpush1.msra.mxu0 %v945
      %1015 = vmatprep.subr.mxu0 0.0
      %1016 = vmatpush1.msra.mxu0 %v946
      %1017 = vmatprep.subr.mxu0 0.0
      %1018 = vmatpush1.msra.mxu0 %v947
      %1019 = vmatprep.subr.mxu0 0.0
      %1020 = vmatpush1.msra.mxu0 %v948
      %1021 = vmatprep.subr.mxu0 0.0
      %1022 = vmatpush1.msra.mxu0 %v949
      %1023 = vmatprep.subr.mxu0 0.0
      %1024 = vmatpush1.msra.mxu0 %v950
      %1025 = vmatprep.subr.mxu0 0.0
      %1026 = vmatpush1.msra.mxu0 %v951
      %1027 = vmatprep.subr.mxu0 0.0
      %1028 = vmatpush1.msra.mxu0 %v952
      %1029 = vmatprep.subr.mxu0 0.0
      %1030 = vmatpush1.msra.mxu0 %v953
      %1031 = vmatprep.subr.mxu0 0.0
      %1032 = vmatpush1.msra.mxu0 %v954
      %1033 = vmatprep.subr.mxu0 0.0
      %1034 = vmatpush1.msra.mxu0 %v955
      %1035 = vmatprep.subr.mxu0 0.0
      %1036 = vmatpush1.msra.mxu0 %v956
      %1037 = vmatprep.mubr.f32.mxu0 %v923
      %1038 = vmatmul.mubr.f32.gmra.mrb[0].mxu0 %v922
      %v1039 = vpop.f32.mrb[0].mxu0
      %v1040 = vadd.f32 0.0, %v1039
      %v1041 = vpop.f32.mrb[0].mxu0
      %1042 = vdwg.mxu0
      %1043 = vmatprep.subr.mxu0 0.0
      %1044 = vmatpush1.msra.mxu0 %v957
      %1045 = vmatprep.subr.mxu0 0.0
      %1046 = vmatpush1.msra.mxu0 %v958
      %1047 = vmatprep.subr.mxu0 0.0
      %1048 = vmatpush1.msra.mxu0 %v959
      %1049 = vmatprep.subr.mxu0 0.0
      %1050 = vmatpush1.msra.mxu0 %v960
      %1051 = vmatprep.subr.mxu0 0.0
      %1052 = vmatpush1.msra.mxu0 %v961
      %1053 = vmatprep.subr.mxu0 0.0
      %1054 = vmatpush1.msra.mxu0 %v962
      %1055 = vmatprep.subr.mxu0 0.0
      %1056 = vmatpush1.msra.mxu0 %v963
      %1057 = vmatprep.subr.mxu0 0.0
      %1058 = vmatpush1.msra.mxu0 %v964
      %1059 = vmatprep.subr.mxu0 0.0
      %1060 = vmatpush1.msra.mxu0 %v965
      %1061 = vmatprep.subr.mxu0 0.0
      %1062 = vmatpush1.msra.mxu0 %v966
      %1063 = vmatprep.subr.mxu0 0.0
      %1064 = vmatpush1.msra.mxu0 %v967
      %1065 = vmatprep.subr.mxu0 0.0
      %1066 = vmatpush1.msra.mxu0 %v968
      %1067 = vmatprep.subr.mxu0 0.0
      %1068 = vmatpush1.msra.mxu0 %v969
      %1069 = vmatprep.subr.mxu0 0.0
      %1070 = vmatpush1.msra.mxu0 %v970
      %1071 = vmatprep.subr.mxu0 0.0
      %1072 = vmatpush1.msra.mxu0 %v971
      %1073 = vmatprep.subr.mxu0 0.0
      %1074 = vmatpush1.msra.mxu0 %v972
      %1075 = vmatprep.subr.mxu0 0.0
      %1076 = vmatpush1.msra.mxu0 0.0
      %1077 = vmatprep.subr.mxu0 0.0
      %1078 = vmatpush1.msra.mxu0 0.0
      %1079 = vmatprep.subr.mxu0 0.0
      %1080 = vmatpush1.msra.mxu0 0.0
      %1081 = vmatprep.subr.mxu0 0.0
      %1082 = vmatpush1.msra.mxu0 0.0
      %1083 = vmatprep.subr.mxu0 0.0
      %1084 = vmatpush1.msra.mxu0 0.0
      %1085 = vmatprep.subr.mxu0 0.0
      %1086 = vmatpush1.msra.mxu0 0.0
      %1087 = vmatprep.subr.mxu0 0.0
      %1088 = vmatpush1.msra.mxu0 0.0
      %1089 = vmatprep.subr.mxu0 0.0
      %1090 = vmatpush1.msra.mxu0 0.0
      %1091 = vmatprep.subr.mxu0 0.0
      %1092 = vmatpush1.msra.mxu0 0.0
      %1093 = vmatprep.subr.mxu0 0.0
      %1094 = vmatpush1.msra.mxu0 0.0
      %1095 = vmatprep.subr.mxu0 0.0
      %1096 = vmatpush1.msra.mxu0 0.0
      %1097 = vmatprep.subr.mxu0 0.0
      %1098 = vmatpush1.msra.mxu0 0.0
      %1099 = vmatprep.subr.mxu0 0.0
      %1100 = vmatpush1.msra.mxu0 0.0
      %1101 = vmatprep.subr.mxu0 0.0
      %1102 = vmatpush1.msra.mxu0 0.0
      %1103 = vmatprep.subr.mxu0 0.0
      %1104 = vmatpush1.msra.mxu0 0.0
      %1105 = vmatprep.subr.mxu0 0.0
      %1106 = vmatpush1.msra.mxu0 0.0
      %1107 = vmatprep.mubr.f32.mxu0 0.0
      %1108 = vmatmul.mubr.f32.gmra.mrb[0].mxu0 %v924
      %v1109 = vpop.f32.mrb[0].mxu0
      %v1110 = vadd.f32 %v1040, %v1109
      %v1111 = vpop.f32.mrb[0].mxu0
      %1112 = vdwg.mxu0
      %vm1113 = vcmask 523264
      %1114 = vst.msk [vmem:[%s276] sm:$0xff] %vm1113, %v1110
      %p1115 = scmp.lt.s32.totalorder %s18, 1
      %s1116 = scalar_select %p1115, %s18, 1
      %s1117 = smul.addr %s1116, 8
      %s1118 = scalar_lea.vmem %s7, %s1117
      // Predicated region
      $region49: #{conv_block_forward.1} parent=47 // pred_check
        %p1119 = pneg %p188
      $region50: #{conv_block_forward.1} parent=47 // pred_check_branch
        %1121 = sbr.rel (%p1119) target = $region52
      $region51: #{conv_block_forward.1} parent=47 // pred_region
        _
      $region52: #{conv_block_forward.1} parent=47 // pred_fallthru
        _
    $region48: #{conv_block_forward.1} parent=5 // pred_fallthru
      _
    %p1122 = scmp.le.s32.totalorder 2, %s13
    // Predicated region
    $region53: #{conv_block_forward.1} parent=5 // pred_check
      %p1123 = pneg %p1122
    $region54: #{conv_block_forward.1} parent=5 // pred_check_branch
      %1125 = sbr.rel (%p1123) target = $region56
    $region55: #{conv_block_forward.1} parent=5 // pred_region
      %s1126 = ssub.s32 %s13, 2
      // Predicated region
      $region57: #{conv_block_forward.1} parent=55 // pred_check
        %p1127 = pneg %p194
      $region58: #{conv_block_forward.1} parent=55 // pred_check_branch
        %1129 = sbr.rel (%p1127) target = $region60
      $region59: #{conv_block_forward.1} parent=55 // pred_region
        %p1130 = scmp.lt.s32.totalorder %s19, 1
        %s1131 = scalar_select %p1130, %s19, 1
        %s1132 = smul.addr %s1131, 8
        %s1133 = scalar_lea.vmem %s7, %s1132
      $region60: #{conv_block_forward.1} parent=55 // pred_fallthru
        _
    $region56: #{conv_block_forward.1} parent=5 // pred_fallthru
      _
  $region6: #{conv_block_forward.1} parent=0 // loop_footer
    %s17 = sadd.s32 1, %s13
  $region7: #{conv_block_forward.1} parent=0 // loop_footer_branch
    %12 = sbr.rel target = $region3
  $region8: #{conv_block_forward.1} parent=0 // loop_exit
    _

</llo_original>
